<compile_context>
chip_gen: v5e
topology: v5e:2x2
jax: 0.10.0
libtpu: 0.0.40
codegen_flags: <defaults>
</compile_context>

<pallas_src>
import functools

import jax
import jax.numpy as jnp
from jax.experimental import pallas as pl
from jax.experimental.pallas import tpu as pltpu


def _focal_loss_kernel(logits_ref, tgt_ref, out_ref, *,
                       gamma, n_rows, tile_n, tiles_per_chunk):
    chunk = pl.program_id(0)
    tile = pl.program_id(1)

    # Init the per-chunk accumulator (output block is resident across the tile axis).
    @pl.when(tile == 0)
    def _():
        out_ref[...] = jnp.zeros_like(out_ref)

    # First row of this tile in global coordinates; skip tiles fully past the end
    # (their DMA is a clamped re-read of the last block; compute would be wasted).
    row0 = (chunk * tiles_per_chunk + tile) * tile_n

    @pl.when(row0 < n_rows)
    def _compute():
        x = logits_ref[...].astype(jnp.float32)                  # (TILE_N, C)
        t = tgt_ref[...]                                         # (TILE_N, 1) int32

        # numerically-stable log-sum-exp along the class (lane) axis
        m = jnp.max(x, axis=-1, keepdims=True)                   # (TILE_N, 1)
        z = x - m
        lse = jnp.log(jnp.sum(jnp.exp(z), axis=-1, keepdims=True))   # (TILE_N, 1)

        # cross entropy without materializing log-softmax:  ce = lse - (x[t] - m)
        cls_ids = jax.lax.broadcasted_iota(jnp.int32, x.shape, 1)    # (TILE_N, C)
        onehot = cls_ids == t
        x_t = jnp.sum(jnp.where(onehot, z, 0.0), axis=-1, keepdims=True)
        ce = lse - x_t                                           # (TILE_N, 1)

        # focal modulation: (1 - pt)^gamma * ce   (pt = exp(-ce))
        pt = jnp.exp(-ce)
        base = 1.0 - pt
        g = float(gamma)
        if g == 0.0:
            mod = jnp.ones_like(base)
        elif g.is_integer() and 0 < g <= 8:
            mod = base
            for _ in range(int(g) - 1):
                mod = mod * base                                  # VPU-only, no pow
        else:
            mod = jnp.maximum(base, 0.0) ** g                     # clamp: avoid NaN from pt>1
        focal = mod * ce                                          # (TILE_N, 1)

        # Mask rows beyond the true N (padded tail rows of the last valid tile).
        row_ids = row0 + jax.lax.broadcasted_iota(jnp.int32, focal.shape, 0)
        valid = row_ids < n_rows
        tile_sum = jnp.sum(jnp.where(valid, focal, 0.0))

        out_ref[...] = out_ref[...] + tile_sum                    # broadcast into (8,128)


def focal_loss(logits, targets, gamma=2.0, *, tile_n=None, num_chunks=None):
    """Pallas TPU focal loss.  logits: (N, C) float, targets: (N,) int class ids."""
    # TODO(synk): per-class `weight` vector (module default is None) is not plumbed through.
    N, C = logits.shape
    itemsize = jnp.dtype(logits.dtype).itemsize

    # --- tile sizing: ~4 MiB of logits per block (bytes-driven, not a fixed row cap),
    #     so small-C inputs still amortize per-grid-step overhead at the HBM roofline.
    if tile_n is None:
        target_bytes = 4 << 20
        tile_n = max(8, min(32768, target_bytes // max(1, C * itemsize)))
    tile_n = max(8, (int(tile_n) // 8) * 8)        # sublane multiple
    n_pad8 = ((N + 7) // 8) * 8
    tile_n = min(tile_n, n_pad8)

    total_tiles = pl.cdiv(N, tile_n)
    if num_chunks is None:
        num_chunks = 2 if total_tiles >= 2 else 1  # 2 TCs on v7x; harmless elsewhere
    num_chunks = max(1, min(int(num_chunks), total_tiles))
    tiles_per_chunk = pl.cdiv(total_tiles, num_chunks)

    tgt2d = targets.reshape(N, 1).astype(jnp.int32)

    def in_map(c, t):
        # clamp so over-hanging tiles of the last chunk re-read the final block
        # (their compute is skipped in-kernel)
        return (jnp.minimum(c * tiles_per_chunk + t, total_tiles - 1), 0)

    def out_map(c, t):
        return (c, 0)

    kernel = functools.partial(
        _focal_loss_kernel, gamma=float(gamma), n_rows=N,
        tile_n=tile_n, tiles_per_chunk=tiles_per_chunk)

    cost = pl.CostEstimate(
        flops=6 * N * C,
        transcendentals=N * C + 3 * N,
        bytes_accessed=N * C * itemsize + N * 4 + num_chunks * 8 * 128 * 4)

    partial_sums = pl.pallas_call(
        kernel,
        out_shape=jax.ShapeDtypeStruct((num_chunks * 8, 128), jnp.float32),
        grid=(num_chunks, tiles_per_chunk),
        in_specs=[
            pl.BlockSpec((tile_n, C), in_map),
            pl.BlockSpec((tile_n, 1), in_map),
        ],
        out_specs=pl.BlockSpec((8, 128), out_map),
        compiler_params=pltpu.CompilerParams(
            dimension_semantics=("parallel", "arbitrary"),
            vmem_limit_bytes=48 << 20),
        cost_estimate=cost,
    )(logits, tgt2d)

    # each chunk's (8,128) block is uniformly filled with that chunk's partial sum
    total = jnp.sum(partial_sums[::8, 0])
    return total / jnp.float32(N)


def _focal_loss_ref(logits, targets, gamma=2.0):
    # pure-JAX reference matching torch semantics (weight=None, reduction='none' then mean)
    logp = jax.nn.log_softmax(logits.astype(jnp.float32), axis=-1)
    ce = -jnp.take_along_axis(logp, targets[:, None].astype(jnp.int32), axis=-1)[:, 0]
    pt = jnp.exp(-ce)
    return jnp.mean((1.0 - pt) ** gamma * ce)


if __name__ == "__main__":
    key = jax.random.PRNGKey(0)

    # Case 1: small canonical shape, default tiling, default gamma=2.0
    k1, k2 = jax.random.split(key)
    N, C = 8, 32
    logits = jax.random.normal(k1, (N, C), dtype=jnp.float32)
    targets = jax.random.randint(k2, (N,), 0, C, dtype=jnp.int32)
    loss = jax.block_until_ready(focal_loss(logits, targets, gamma=2.0))
    ref = jax.block_until_ready(_focal_loss_ref(logits, targets, gamma=2.0))
    assert jnp.allclose(loss, ref, rtol=1e-5, atol=1e-6), (loss, ref)

    # Case 2: N not a multiple of the tile -> multi-tile grid, 2 chunks,
    #         tail-row masking and skipped (clamped) over-hang tiles.
    k3, k4 = jax.random.split(k1)
    N2, C2 = 20, 32
    logits2 = jax.random.normal(k3, (N2, C2), dtype=jnp.float32)
    targets2 = jax.random.randint(k4, (N2,), 0, C2, dtype=jnp.int32)
    loss2 = jax.block_until_ready(
        focal_loss(logits2, targets2, gamma=2.0, tile_n=8, num_chunks=2))
    ref2 = jax.block_until_ready(_focal_loss_ref(logits2, targets2, gamma=2.0))
    assert jnp.allclose(loss2, ref2, rtol=1e-5, atol=1e-6), (loss2, ref2)

    # Case 3: non-integer gamma path (pow with clamped base)
    loss3 = jax.block_until_ready(focal_loss(logits2, targets2, gamma=1.5, tile_n=8))
    ref3 = jax.block_until_ready(_focal_loss_ref(logits2, targets2, gamma=1.5))
    assert jnp.allclose(loss3, ref3, rtol=1e-5, atol=1e-6), (loss3, ref3)

    # Case 4: bf16 logits (native-dtype DMA, in-kernel f32 upcast), default tiling
    logits4 = logits2.astype(jnp.bfloat16)
    loss4 = jax.block_until_ready(focal_loss(logits4, targets2, gamma=2.0))
    ref4 = jax.block_until_ready(_focal_loss_ref(logits4, targets2, gamma=2.0))
    assert jnp.allclose(loss4, ref4, rtol=5e-3, atol=5e-3), (loss4, ref4)

    print("KERNEL_OK")
</pallas_src>

<mosaic_0001>
module attributes {stable_mosaic.version = 11 : i64} {
  func.func @_focal_loss_kernel(%arg0: i32, %arg1: i32, %arg2: memref<8x32xf32, #tpu.memory_space<vmem>>, %arg3: memref<8x1xi32, #tpu.memory_space<vmem>>, %arg4: memref<8x128xf32, #tpu.memory_space<vmem>>) attributes {dimension_semantics = [#tpu.dimension_semantics<parallel>, #tpu.dimension_semantics<arbitrary>], iteration_bounds = array<i64: 1, 1>, scalar_prefetch = 0 : i64, scratch_operands = 0 : i64, tpu.core_type = #tpu.core_type<tc>, window_params = [{transform_indices = @transform_0, window_bounds = array<i64: 8, 32>}, {transform_indices = @transform_1, window_bounds = array<i64: 8, 1>}, {transform_indices = @transform_2, window_bounds = array<i64: 8, 128>}]} {
    %c0_i32 = arith.constant 0 : i32
    %0 = arith.cmpi eq, %arg1, %c0_i32 : i32
    %1 = arith.extui %0 : i1 to i32
    %c0_i32_0 = arith.constant 0 : i32
    %2 = arith.cmpi ne, %1, %c0_i32_0 : i32
    scf.if %2 {
      %cst = arith.constant 0.000000e+00 : f32
      %9 = vector.broadcast %cst : f32 to vector<8x128xf32>
      %c0 = arith.constant 0 : index
      %c0_3 = arith.constant 0 : index
      %10 = vector.load %arg4[%c0, %c0_3] : memref<8x128xf32, #tpu.memory_space<vmem>>, vector<8x128xf32>
      tpu.vector_store %arg4[%c0, %c0_3], %9 {strides = array<i32>} : memref<8x128xf32, #tpu.memory_space<vmem>>, vector<8x128xf32>,
    } else {
    }
    %c1_i32 = arith.constant 1 : i32
    %3 = arith.muli %arg0, %c1_i32 : i32
    %4 = arith.addi %3, %arg1 : i32
    %c8_i32 = arith.constant 8 : i32
    %5 = arith.muli %4, %c8_i32 : i32
    %c8_i32_1 = arith.constant 8 : i32
    %6 = arith.cmpi slt, %5, %c8_i32_1 : i32
    %7 = arith.extui %6 : i1 to i32
    %c0_i32_2 = arith.constant 0 : i32
    %8 = arith.cmpi ne, %7, %c0_i32_2 : i32
    scf.if %8 {
      %c0 = arith.constant 0 : index
      %c0_3 = arith.constant 0 : index
      %9 = vector.load %arg2[%c0, %c0_3] : memref<8x32xf32, #tpu.memory_space<vmem>>, vector<8x32xf32>
      %c0_4 = arith.constant 0 : index
      %c0_5 = arith.constant 0 : index
      %10 = vector.load %arg3[%c0_4, %c0_5] : memref<8x1xi32, #tpu.memory_space<vmem>>, vector<8x1xi32>
      %cst = arith.constant dense<0xFF800000> : vector<8xf32>
      %11 = vector.multi_reduction <maximumf>, %9, %cst [1] : vector<8x32xf32> to vector<8xf32>
      %12 = vector.shape_cast %11 : vector<8xf32> to vector<8x1xf32>
      %13 = vector.broadcast %12 : vector<8x1xf32> to vector<8x32xf32>
      %14 = arith.subf %9, %13 : vector<8x32xf32>
      %15 = math.exp %14 : vector<8x32xf32>
      %cst_6 = arith.constant dense<0.000000e+00> : vector<8xf32>
      %16 = vector.multi_reduction <add>, %15, %cst_6 [1] : vector<8x32xf32> to vector<8xf32>
      %17 = vector.shape_cast %16 : vector<8xf32> to vector<8x1xf32>
      %18 = math.log %17 : vector<8x1xf32>
      %19 = tpu.iota {dimensions = array<i32: 1>} : vector<8x32xi32>
      %20 = vector.broadcast %10 : vector<8x1xi32> to vector<8x32xi32>
      %21 = arith.cmpi eq, %19, %20 : vector<8x32xi32>
      %cst_7 = arith.constant 0.000000e+00 : f32
      %22 = vector.broadcast %cst_7 : f32 to vector<8x32xf32>
      %23 = arith.select %21, %14, %22 : vector<8x32xi1>, vector<8x32xf32>
      %cst_8 = arith.constant dense<0.000000e+00> : vector<8xf32>
      %24 = vector.multi_reduction <add>, %23, %cst_8 [1] : vector<8x32xf32> to vector<8xf32>
      %25 = vector.shape_cast %24 : vector<8xf32> to vector<8x1xf32>
      %26 = arith.subf %18, %25 : vector<8x1xf32>
      %cst_9 = arith.constant 0.000000e+00 : f32
      %27 = vector.broadcast %cst_9 : f32 to vector<8x1xf32>
      %28 = arith.subf %27, %26 : vector<8x1xf32>
      %29 = math.exp %28 : vector<8x1xf32>
      %cst_10 = arith.constant 1.000000e+00 : f32
      %30 = vector.broadcast %cst_10 : f32 to vector<8x1xf32>
      %31 = arith.subf %30, %29 : vector<8x1xf32>
      %32 = arith.mulf %31, %31 : vector<8x1xf32>
      %33 = arith.mulf %32, %26 : vector<8x1xf32>
      %34 = tpu.iota {dimensions = array<i32: 0>} : vector<8x1xi32>
      %35 = vector.broadcast %5 : i32 to vector<8x1xi32>
      %36 = arith.addi %35, %34 : vector<8x1xi32>
      %c8_i32_11 = arith.constant 8 : i32
      %37 = vector.broadcast %c8_i32_11 : i32 to vector<8x1xi32>
      %38 = arith.cmpi slt, %36, %37 : vector<8x1xi32>
      %cst_12 = arith.constant 0.000000e+00 : f32
      %39 = vector.broadcast %cst_12 : f32 to vector<8x1xf32>
      %40 = arith.select %38, %33, %39 : vector<8x1xi1>, vector<8x1xf32>
      %41 = vector.shape_cast %40 : vector<8x1xf32> to vector<1x8x1xf32>
      %cst_13 = arith.constant dense<0.000000e+00> : vector<1xf32>
      %42 = vector.multi_reduction <add>, %41, %cst_13 [1, 2] : vector<1x8x1xf32> to vector<1xf32>
      %43 = vector.shape_cast %42 : vector<1xf32> to vector<1x1x1xf32>
      %44 = vector.extract %43[0, 0, 0] : f32 from vector<1x1x1xf32>
      %c0_14 = arith.constant 0 : index
      %c0_15 = arith.constant 0 : index
      %45 = vector.load %arg4[%c0_14, %c0_15] : memref<8x128xf32, #tpu.memory_space<vmem>>, vector<8x128xf32>
      %46 = vector.broadcast %44 : f32 to vector<8x128xf32>
      %47 = arith.addf %45, %46 : vector<8x128xf32>
      %c0_16 = arith.constant 0 : index
      %c0_17 = arith.constant 0 : index
      %48 = vector.load %arg4[%c0_16, %c0_17] : memref<8x128xf32, #tpu.memory_space<vmem>>, vector<8x128xf32>
      tpu.vector_store %arg4[%c0_16, %c0_17], %47 {strides = array<i32>} : memref<8x128xf32, #tpu.memory_space<vmem>>, vector<8x128xf32>,
    } else {
    }
    return
  }
  func.func @transform_0(%arg0: i32, %arg1: i32) -> (i32, i32) {
    %c1_i32 = arith.constant 1 : i32
    %0 = arith.muli %arg0, %c1_i32 : i32
    %1 = arith.addi %0, %arg1 : i32
    %c0_i32 = arith.constant 0 : i32
    %2 = arith.minsi %1, %c0_i32 : i32
    %c0_i32_0 = arith.constant 0 : i32
    %c0_i32_1 = arith.constant 0 : i32
    return %2, %c0_i32_0 : i32, i32
  }
  func.func @transform_1(%arg0: i32, %arg1: i32) -> (i32, i32) {
    %c1_i32 = arith.constant 1 : i32
    %0 = arith.muli %arg0, %c1_i32 : i32
    %1 = arith.addi %0, %arg1 : i32
    %c0_i32 = arith.constant 0 : i32
    %2 = arith.minsi %1, %c0_i32 : i32
    %c0_i32_0 = arith.constant 0 : i32
    %c0_i32_1 = arith.constant 0 : i32
    return %2, %c0_i32_0 : i32, i32
  }
  func.func @transform_2(%arg0: i32, %arg1: i32) -> (i32, i32) {
    %c0_i32 = arith.constant 0 : i32
    %c0_i32_0 = arith.constant 0 : i32
    return %arg0, %c0_i32 : i32, i32
  }
}

</mosaic_0001>

<llo_original>
// kernel: tpu_custom_call.1
$region0: #{tpu_custom_call.1}
  #allocation0 [shape = 'u32[]', space=smem, size = 0x4, offset = 0x4, fixed_abs, tag = 'smem constant byte address 0x4 - core index']
  #allocation1 [shape = 'u32[72,128]{1,0:T(1,128)}', space=vmem, size = 0x9000, scoped, tag = 'internal scratch']
  %s0 = inlined_call_operand.vmem [shape: f32[8,32], index: 0, kind: input, shape index: {}]
  %s1 = inlined_call_operand.vmem [shape: s32[8,1], index: 1, kind: input, shape index: {}]
  %s2 = inlined_call_operand.hbm [shape: f32[8,128], index: 2, kind: output, shape index: {}]
  %s3 = sld [smem:[#allocation0]]
  $region26: #{tpu_custom_call.1} parent=0
    _
  %s5 = ssub.s32 1, %s3
  %s6 = scalar_select 0, %s5, %s3
  $region1: #{tpu_custom_call.1} parent=0
    #allocation2 [shape = 'u8[4096]{0}', space=vmem, size = 0x1000, scoped, tag = 'output window, operand 0, single buffered']
    #allocation3 [shape = 's32[1]{0}', space=sflag, size = 0x4, scoped, tag = 'scoped memory for tpu_custom_call.1']
    %7 = vsyncpa [#allocation3], 0
    // Predicated region
    $region2: #{tpu_custom_call.1} parent=1 // pred_check
      _
    $region3: #{tpu_custom_call.1} parent=1 // pred_check_branch
      %9 = sbr.rel (0) target = $region5
    $region4: #{tpu_custom_call.1} parent=1 // pred_region
      %s10 = sadd.s32 0, 0
      %p11 = scmp.lt.s32.totalorder %s10, 0
      %s12 = scalar_select %p11, %s10, 0
      %p13 = scmp.lt.s32.totalorder %s12, 0
      %s14 = scalar_select %p13, %s12, 0
      %s15 = smul.addr %s14, 8
      %s16 = scalar_lea.vmem %s0, %s15
      %s17 = sadd.s32 0, 0
      %p18 = scmp.lt.s32.totalorder %s17, 0
      %s19 = scalar_select %p18, %s17, 0
    $region5: #{tpu_custom_call.1} parent=1 // pred_fallthru
      _
    // Predicated region
    $region6: #{tpu_custom_call.1} parent=1 // pred_check
      _
    $region7: #{tpu_custom_call.1} parent=1 // pred_check_branch
      %21 = sbr.rel (0) target = $region9
    $region8: #{tpu_custom_call.1} parent=1 // pred_region
      %s22 = sadd.s32 0, 0
      %p23 = scmp.lt.s32.totalorder %s22, 0
      %s24 = scalar_select %p23, %s22, 0
      %p25 = scmp.lt.s32.totalorder %s24, 0
      %s26 = scalar_select %p25, %s24, 0
      %s27 = smul.addr %s26, 8
      %s28 = scalar_lea.vmem %s1, %s27
      %s29 = sadd.s32 0, 0
      %p30 = scmp.lt.s32.totalorder %s29, 0
      %s31 = scalar_select %p30, %s29, 0
    $region9: #{tpu_custom_call.1} parent=1 // pred_fallthru
      _
    %s32 = sadd.s32 0, 0
    %p33 = scmp.lt.s32.totalorder %s32, 0
    %s34 = scalar_select %p33, %s32, 0
    %p35 = scmp.lt.s32.totalorder %s34, 0
    %s36 = scalar_select %p35, %s34, 0
    %s37 = smul.addr %s36, 8
    %s38 = scalar_lea.vmem %s0, %s37
    %s39 = sadd.s32 0, 0
    %p40 = scmp.lt.s32.totalorder %s39, 0
    %s41 = scalar_select %p40, %s39, 0
    %p42 = scmp.lt.s32.totalorder %s41, 0
    %s43 = scalar_select %p42, %s41, 0
    %s44 = smul.addr %s43, 8
    %s45 = scalar_lea.vmem %s1, %s44
    %s46 = sadd.s32 0, 0
    %p47 = scmp.lt.s32.totalorder %s46, 0
    %s48 = scalar_select %p47, %s46, 0
    %p49 = scmp.lt.s32.totalorder %s48, 0
    %s50 = scalar_select %p49, %s48, 0
    %s51 = smul.addr %s50, 8
    %s52 = scalar_lea.vmem %s0, %s51
    %s53 = sadd.s32 0, 0
    %p54 = scmp.lt.s32.totalorder %s53, 0
    %s55 = scalar_select %p54, %s53, 0
    %s56 = sadd.s32 0, 0
    %p57 = scmp.lt.s32.totalorder %s56, 0
    %s58 = scalar_select %p57, %s56, 0
    %p59 = scmp.lt.s32.totalorder %s58, 0
    %s60 = scalar_select %p59, %s58, 0
    %s61 = smul.addr %s60, 8
    %s62 = scalar_lea.vmem %s1, %s61
    %s63 = sadd.s32 0, 0
    %p64 = scmp.lt.s32.totalorder %s63, 0
    %s65 = scalar_select %p64, %s63, 0
    %p66 = scmp.eq.s32.totalorder 0, 0
    // Predicated region
    $region10: #{tpu_custom_call.1} parent=1 // pred_check
      %p67 = pneg %p66
    $region11: #{tpu_custom_call.1} parent=1 // pred_check_branch
      %69 = sbr.rel (%p67) target = $region13
    $region12: #{tpu_custom_call.1} parent=1 // pred_region
      %70 = vst [vmem:[#allocation2] sm:$0xff] 0.0
    $region13: #{tpu_custom_call.1} parent=1 // pred_fallthru
      _
    %s71 = sadd.s32 0, 0
    %s72 = smul.u32 %s71, 8
    %p73 = scmp.lt.s32.totalorder %s72, 8
    // Predicated region
    $region14: #{tpu_custom_call.1} parent=1 // pred_check
      %p74 = pneg %p73
    $region15: #{tpu_custom_call.1} parent=1 // pred_check_branch
      %76 = sbr.rel (%p74) target = $region17
    $region16: #{tpu_custom_call.1} parent=1 // pred_region
      %v77 = vld [vmem:[%s52] sm:$0xff]
      %v78 = vld [vmem:[%s62] sm:$0xff]
      %vm79 = vcmask 261120
      %v80 = vsel %vm79, %v77, -inf
      %81 = vmax.xlane.f32.xlu0 %v80
      %v82 = vpop.xlane.xlu0 %81
      %v83 = vsub.f32 %v77, %v82
      %v84 = vmul.f32 %v83, 1.442695
      %v85 = vpow.pop %v84
      %v86 = vsel %vm79, %v85, 0.0
      %87 = vadd.xlane.f32.xlu0 %v86
      %v88 = vpop.xlane.xlu0 %87
      %v89 = vlog2.pop %v88
      %v90 = vmul.f32 %v89, 0.6931472
      %v91 = vlaneseq
      %v92 = vand.u32 %v91, 127
      %93 = vset.pattern.permute.xlu0 0
      %94 = vperm.xlu0 %93, %v78
      %v95 = vpop.permute.xlu0 %94
      %vm96 = vcmp.eq.s32.totalorder %v92, %v95
      %v97 = vsel %vm96, %v83, 0.0
      %v98 = vsel %vm79, %v97, 0.0
      %99 = vadd.xlane.f32.xlu0 %v98
      %v100 = vpop.xlane.xlu0 %99
      %v101 = vsub.f32 %v90, %v100
      %v102 = vsub.f32 0.0, %v101
      %v103 = vmul.f32 %v102, 1.442695
      %v104 = vpow.pop %v103
      %v105 = vsub.f32 1.0, %v104
      %v106 = vmul.f32 %v105, %v105
      %v107 = vmul.f32 %v106, %v101
      %v108 = vlaneseq
      %v109 = vshrl.u32 %v108, 7
      %v110 = vstv %s72
      %v111 = vadd.s32 %v110, %v109
      %vm112 = vcmp.lt.s32.totalorder %v111, 8
      %v113 = vsel %vm112, %v107, 0.0
      %vm114 = vcmask 7168
      %v115 = vsel %vm114, %v113, 0.0
      %116 = vadd.xlane.f32.xlu0 %v115
      %v117 = vpop.xlane.xlu0 %116
      %v118 = vrot.slane %v117, 4
      %v119 = vadd.f32 %v117, %v118
      %v120 = vrot.slane %v119, 2
      %v121 = vadd.f32 %v119, %v120
      %v122 = vrot.slane %v121, 1
      %v123 = vadd.f32 %v121, %v122
      %s124 = vtos %v123
      %v125 = vld [vmem:[#allocation2] sm:$0xff]
      %v126 = vstv %s124
      %v127 = vadd.f32 %v125, %v126
      %128 = vst [vmem:[#allocation2] sm:$0xff] %v127
    $region17: #{tpu_custom_call.1} parent=1 // pred_fallthru
      _
    // Predicated region
    $region18: #{tpu_custom_call.1} parent=1 // pred_check
      _
    $region19: #{tpu_custom_call.1} parent=1 // pred_check_branch
      %130 = sbr.rel (0) target = $region21
    $region20: #{tpu_custom_call.1} parent=1 // pred_region
      %132 = vsyncadd [#allocation3], 0
      %s134 = sshll.u32 [#allocation2], 4
      %s135 = int_to_ptr.vmem [resolvable:$true] %s134
      %s136 = sshll.u32 %s2, 4
      %s137 = int_to_ptr.hbm [resolvable:$true] %s136
      %139 = dma.vmem_to_hbm [thread:$0]  %s135, 128, %s137, [#allocation3]
    $region21: #{tpu_custom_call.1} parent=1 // pred_fallthru
      _
    // Predicated region
    $region22: #{tpu_custom_call.1} parent=1 // pred_check
      _
    $region23: #{tpu_custom_call.1} parent=1 // pred_check_branch
      %141 = sbr.rel (0) target = $region25
    $region24: #{tpu_custom_call.1} parent=1 // pred_region
      %143 = dma.done [#allocation3], 128
    $region25: #{tpu_custom_call.1} parent=1 // pred_fallthru
      _
    %144 = vsyncpa [#allocation3], 1

</llo_original>
